<compile_context>
chip_gen: v7x
topology: tpu7x:2x2x1
jax: 0.10.0
libtpu: 0.0.40
codegen_flags: <defaults>
</compile_context>

<pallas_src>
import jax
import jax.numpy as jnp
from jax import lax
from jax.experimental import pallas as pl
from jax.experimental.pallas import tpu as pltpu

EXPANSION = 4          # standard ResNet bottleneck expansion
BN_EPS = 1e-5
DEFAULT_TM = 512       # rows per M-tile for the 1x1 (matmul) kernels


# ----------------------------- Pallas kernels ------------------------------ #

def _make_linear_kernel(has_preact, has_proj, has_residual, do_relu):
    """out = [relu]( [relu(x*ps+pb)] @ w + b [+ xs @ ws] [+ res] )."""
    def kernel(*refs):
        it = iter(refs)
        x_ref, w_ref, b_ref = next(it), next(it), next(it)
        if has_preact:
            ps_ref, pb_ref = next(it), next(it)
        if has_proj:
            xs_ref, ws_ref = next(it), next(it)
        if has_residual:
            r_ref = next(it)
        out_ref = next(it)

        x = x_ref[...]
        if has_preact:
            # BN + ReLU on the input (f32 elementwise), back to bf16 for MXU.
            xa = x.astype(jnp.float32) * ps_ref[...] + pb_ref[...]
            x = jnp.maximum(xa, 0.0).astype(x_ref.dtype)

        acc = jnp.dot(x, w_ref[...], preferred_element_type=jnp.float32)
        acc = acc + b_ref[...]
        if has_proj:
            acc = acc + jnp.dot(xs_ref[...], ws_ref[...],
                                preferred_element_type=jnp.float32)
        if has_residual:
            acc = acc + r_ref[...].astype(jnp.float32)
        if do_relu:
            acc = jnp.maximum(acc, 0.0)
        out_ref[...] = acc.astype(out_ref.dtype)
    return kernel


def linear_block(x, w, b, *, preact=None, proj=None, residual=None,
                 relu=False, out_dtype=jnp.bfloat16, tm=DEFAULT_TM):
    """Fused 1x1 conv (matmul) + bias (+ fused skip matmul / residual) + ReLU.

    Tiled over M with a parallel grid; bf16 operands, f32 accumulation.
    """
    M, Cin = x.shape
    Cout = w.shape[1]
    TM = M if M <= tm else tm                      # TM == M or multiple of 8
    grid = (pl.cdiv(M, TM),)

    def row_spec(c):
        return pl.BlockSpec((TM, c), lambda i: (i, 0))

    def full_spec(r, c):
        return pl.BlockSpec((r, c), lambda i: (0, 0))

    in_specs = [row_spec(Cin), full_spec(Cin, Cout), full_spec(1, Cout)]
    inputs = [x.astype(jnp.bfloat16), w.astype(jnp.bfloat16),
              jnp.reshape(b, (1, Cout)).astype(jnp.float32)]
    if preact is not None:
        ps, pb = preact
        in_specs += [full_spec(1, Cin), full_spec(1, Cin)]
        inputs += [jnp.reshape(ps, (1, Cin)).astype(jnp.float32),
                   jnp.reshape(pb, (1, Cin)).astype(jnp.float32)]
    if proj is not None:
        xs, ws = proj
        Cs = xs.shape[1]
        in_specs += [row_spec(Cs), full_spec(Cs, Cout)]
        inputs += [xs.astype(jnp.bfloat16), ws.astype(jnp.bfloat16)]
    if residual is not None:
        in_specs += [row_spec(Cout)]
        inputs += [residual.astype(jnp.bfloat16)]

    kernel = _make_linear_kernel(preact is not None, proj is not None,
                                 residual is not None, relu)
    return pl.pallas_call(
        kernel,
        out_shape=jax.ShapeDtypeStruct((M, Cout), out_dtype),
        grid=grid,
        in_specs=in_specs,
        out_specs=pl.BlockSpec((TM, Cout), lambda i: (i, 0)),
        compiler_params=pltpu.CompilerParams(
            dimension_semantics=("parallel",)),
    )(*inputs)


def _make_conv3x3_kernel(stride, Wacc, Ho):
    """3x3 conv as 9 shifted flattened-row slices of a padded plane, fused
    bias + ReLU epilogue, f32 VMEM accumulator."""
    L = Ho * Wacc
    def kernel(src_ref, w_ref, b_ref, out_ref, acc_ref):
        for kh in range(3):
            for kw in range(3):
                plane = (kh % stride) * stride + (kw % stride)
                start = (kh // stride) * Wacc + (kw // stride)
                lhs = src_ref[0, plane, pl.ds(start, L), :]       # (L, Cin) bf16
                contrib = jnp.dot(lhs, w_ref[kh * 3 + kw],
                                  preferred_element_type=jnp.float32)
                if kh == 0 and kw == 0:
                    acc_ref[...] = contrib
                else:
                    acc_ref[...] += contrib
        y = jnp.maximum(acc_ref[...] + b_ref[...], 0.0)
        out_ref[0] = y.astype(out_ref.dtype)
    return kernel


def conv3x3_block(y_nhwc, w_taps, b, stride, *, out_dtype=jnp.bfloat16):
    """Fused 3x3 conv (padding=1, given stride) + folded-BN bias + ReLU.

    The padded input is read once per image; row-wrap contamination only hits
    the (Wacc - Wo) junk columns, which are trimmed at the wrapper.
    """
    N, H, W, C = y_nhwc.shape
    assert H % stride == 0 and W % stride == 0, "H, W must divide stride"
    Ho, Wo = H // stride, W // stride
    Cout = w_taps.shape[-1]

    # pad 1 on each side (3x3, padding=1) + `stride` extra zero rows at the
    # bottom so shifted flattened-row slices never run out of bounds.
    yp = jnp.pad(y_nhwc.astype(jnp.bfloat16),
                 ((0, 0), (1, 1 + stride), (1, 1), (0, 0)))
    if stride == 1:
        planes = yp[:, None]                                  # (N,1,H+3,W+2,C)
    else:  # stride == 2: parity planes, each (N, Ho+2, Wo+1, C)
        planes = jnp.stack([yp[:, ph::2, pw::2, :]
                            for ph in range(2) for pw in range(2)], axis=1)
    S2, Hp, Wacc = planes.shape[1], planes.shape[2], planes.shape[3]
    Lp = Hp * Wacc                    # flattened plane length
    L = Ho * Wacc                     # output rows per image (incl. junk cols)
    src = planes.reshape(N, S2, Lp, C)

    kernel = _make_conv3x3_kernel(stride, Wacc, Ho)
    out = pl.pallas_call(
        kernel,
        out_shape=jax.ShapeDtypeStruct((N, L, Cout), out_dtype),
        grid=(N,),
        in_specs=[pl.BlockSpec((1, S2, Lp, C), lambda n: (n, 0, 0, 0)),
                  pl.BlockSpec((9, C, Cout), lambda n: (0, 0, 0)),
                  pl.BlockSpec((1, Cout), lambda n: (0, 0))],
        out_specs=pl.BlockSpec((1, L, Cout), lambda n: (n, 0, 0)),
        scratch_shapes=[pltpu.VMEM((L, Cout), jnp.float32)],
        compiler_params=pltpu.CompilerParams(
            dimension_semantics=("parallel",)),
    )(src, w_taps.astype(jnp.bfloat16),
      jnp.reshape(b, (1, Cout)).astype(jnp.float32))

    # drop the junk columns that carried row-wrap contamination
    return out.reshape(N, Ho, Wacc, Cout)[:, :, :Wo, :]


# ----------------------------- glue helpers -------------------------------- #

def _fold_bn(gamma, beta, mean, var):
    scale = gamma / jnp.sqrt(var + BN_EPS)
    return scale, beta - mean * scale


def init_params(key, in_channels, num_channels, stride, use_pre_activation):
    out_channels = EXPANSION * num_channels
    keys = iter(jax.random.split(key, 32))

    def conv_w(cout, cin, k):   # PyTorch layout (Cout, Cin, kh, kw)
        return 0.1 * jax.random.normal(next(keys), (cout, cin, k, k), jnp.float32)

    def bn_p(c):
        return dict(gamma=1.0 + 0.1 * jax.random.normal(next(keys), (c,), jnp.float32),
                    beta=0.1 * jax.random.normal(next(keys), (c,), jnp.float32),
                    mean=0.1 * jax.random.normal(next(keys), (c,), jnp.float32),
                    var=1.0 + 0.1 * jax.random.uniform(next(keys), (c,), jnp.float32))

    p = {
        'conv1_w': conv_w(num_channels, in_channels, 1),
        'conv2_w': conv_w(num_channels, num_channels, 3),
        'conv3_w': conv_w(out_channels, num_channels, 1),
        'norm1': bn_p(in_channels if use_pre_activation else num_channels),
        'norm2': bn_p(num_channels),
        'norm3': bn_p(num_channels if use_pre_activation else out_channels),
    }
    if stride != 1 or in_channels != out_channels:
        p['skip_conv_w'] = conv_w(out_channels, in_channels, 1)
        p['skip_norm'] = bn_p(out_channels)
    return p


# ----------------------------- forward pass -------------------------------- #

def bottleneck_forward(x_nchw, params, *, stride=1, use_pre_activation=False):
    x = jnp.transpose(x_nchw, (0, 2, 3, 1)).astype(jnp.float32)     # NHWC
    N, H, W, Cin = x.shape
    Cmid = params['conv1_w'].shape[0]
    Cout = params['conv3_w'].shape[0]
    Ho, Wo = H // stride, W // stride
    M, M_out = N * H * W, N * Ho * Wo

    # fold BN (inference) into per-channel scale/bias, at f32.
    s1, b1 = _fold_bn(**params['norm1'])
    s2, b2 = _fold_bn(**params['norm2'])
    s3, b3 = _fold_bn(**params['norm3'])

    # conv weights as (Cin, Cout) / (9, Cin, Cout) tap matrices
    w1 = params['conv1_w'][:, :, 0, 0].T
    w2 = jnp.stack([params['conv2_w'][:, :, kh, kw].T
                    for kh in range(3) for kw in range(3)], axis=0)
    w3 = params['conv3_w'][:, :, 0, 0].T

    has_proj = 'skip_conv_w' in params
    if has_proj:
        ss, bs = _fold_bn(**params['skip_norm'])
        ws = params['skip_conv_w'][:, :, 0, 0].T * ss[None, :]       # BN folded
        xs = x[:, ::stride, ::stride, :].reshape(M_out, Cin)
    x_flat = x.reshape(M, Cin)

    if use_pre_activation:
        # y1a = relu(bn2(conv1(relu(bn1(x)))))  -> input of the 3x3 conv
        y1a = linear_block(x_flat, w1 * s2[None, :], b2,
                           preact=(s1, b1), relu=True)
        y1a = y1a.reshape(N, H, W, Cmid)
        # y2a = relu(bn3(conv2(y1a)))           -> input of conv3
        y2a = conv3x3_block(y1a, w2 * s3[None, None, :], b3, stride)
        y2f = y2a.reshape(M_out, Cmid)
        # out = conv3(y2a) + skip               (no final relu)
        if has_proj:
            out = linear_block(y2f, w3, bs, proj=(xs, ws),
                               relu=False, out_dtype=jnp.float32)
        else:
            out = linear_block(y2f, w3, jnp.zeros((Cout,), jnp.float32),
                               residual=x_flat, relu=False,
                               out_dtype=jnp.float32)
    else:
        # y1 = relu(bn1(conv1(x)))
        y1 = linear_block(x_flat, w1 * s1[None, :], b1, relu=True)
        y1 = y1.reshape(N, H, W, Cmid)
        # y2 = relu(bn2(conv2(y1)))
        y2 = conv3x3_block(y1, w2 * s2[None, None, :], b2, stride)
        y2f = y2.reshape(M_out, Cmid)
        # out = relu(bn3(conv3(y2)) + skip)
        if has_proj:
            out = linear_block(y2f, w3 * s3[None, :], b3 + bs, proj=(xs, ws),
                               relu=True, out_dtype=jnp.float32)
        else:
            out = linear_block(y2f, w3 * s3[None, :], b3,
                               residual=x_flat, relu=True,
                               out_dtype=jnp.float32)

    out = out.reshape(N, Ho, Wo, Cout)
    return jnp.transpose(out, (0, 3, 1, 2))


# ----------------------- pure-JAX reference (NCHW) ------------------------- #

def reference_forward(x_nchw, params, *, stride=1, use_pre_activation=False):
    def conv(v, w, stride=1, padding=0):
        return lax.conv_general_dilated(v, w, (stride, stride),
                                        [(padding, padding)] * 2,
                                        dimension_numbers=('NCHW', 'OIHW', 'NCHW'))

    def bn(v, p):
        s = p['gamma'] / jnp.sqrt(p['var'] + BN_EPS)
        b = p['beta'] - p['mean'] * s
        return v * s[None, :, None, None] + b[None, :, None, None]

    relu = lambda v: jnp.maximum(v, 0.0)

    skip = (bn(conv(x_nchw, params['skip_conv_w'], stride=stride), params['skip_norm'])
            if 'skip_conv_w' in params else x_nchw)

    v = x_nchw
    if use_pre_activation:
        v = conv(relu(bn(v, params['norm1'])), params['conv1_w'])
        v = conv(relu(bn(v, params['norm2'])), params['conv2_w'], stride=stride, padding=1)
        v = conv(relu(bn(v, params['norm3'])), params['conv3_w'])
        v = v + skip
    else:
        v = relu(bn(conv(v, params['conv1_w']), params['norm1']))
        v = relu(bn(conv(v, params['conv2_w'], stride=stride, padding=1), params['norm2']))
        v = bn(conv(v, params['conv3_w']), params['norm3'])
        v = relu(v + skip)
    return v


# --------------------------------- main ------------------------------------ #

if __name__ == "__main__":
    key = jax.random.PRNGKey(0)
    N, H, W = 2, 8, 8
    kx, kp = jax.random.split(key)

    ok = True
    # (8, 4): projection skip; (16, 4): identity skip at stride=1.
    for in_channels, num_channels in ((8, 4), (16, 4)):
        x = jax.random.normal(kx, (N, in_channels, H, W), jnp.float32)
        for stride in (1, 2):
            for pre_act in (False, True):
                params = init_params(kp, in_channels, num_channels, stride, pre_act)
                out = jax.block_until_ready(
                    bottleneck_forward(x, params, stride=stride,
                                       use_pre_activation=pre_act))
                ref = reference_forward(x, params, stride=stride,
                                        use_pre_activation=pre_act)
                err = float(jnp.max(jnp.abs(out - ref)))
                if out.shape != ref.shape or not bool(
                        jnp.allclose(out, ref, rtol=3e-2, atol=3e-2)):
                    ok = False
                    print(f"MISMATCH cin={in_channels} stride={stride} "
                          f"pre_act={pre_act} max_err={err}")
    if ok:
        print("KERNEL_OK")
</pallas_src>

<mosaic_0001>
module attributes {stable_mosaic.version = 11 : i64} {
  func.func @kernel(%arg0: i32, %arg1: memref<128x8xbf16, #tpu.memory_space<vmem>>, %arg2: memref<8x4xbf16, #tpu.memory_space<vmem>>, %arg3: memref<1x4xf32, #tpu.memory_space<vmem>>, %arg4: memref<128x4xbf16, #tpu.memory_space<vmem>>) attributes {dimension_semantics = [#tpu.dimension_semantics<parallel>], iteration_bounds = array<i64: 1>, scalar_prefetch = 0 : i64, scratch_operands = 0 : i64, tpu.core_type = #tpu.core_type<tc>, window_params = [{transform_indices = @transform_0, window_bounds = array<i64: 128, 8>}, {pipeline_mode = #tpu.pipeline_mode<synchronous>, transform_indices = @transform_1, window_bounds = array<i64: 8, 4>}, {pipeline_mode = #tpu.pipeline_mode<synchronous>, transform_indices = @transform_2, window_bounds = array<i64: 1, 4>}, {transform_indices = @transform_3, window_bounds = array<i64: 128, 4>}]} {
    %c0 = arith.constant 0 : index
    %c0_0 = arith.constant 0 : index
    %0 = vector.load %arg1[%c0, %c0_0] : memref<128x8xbf16, #tpu.memory_space<vmem>>, vector<128x8xbf16>
    %c0_1 = arith.constant 0 : index
    %c0_2 = arith.constant 0 : index
    %1 = vector.load %arg2[%c0_1, %c0_2] : memref<8x4xbf16, #tpu.memory_space<vmem>>, vector<8x4xbf16>
    %cst = arith.constant dense<0.000000e+00> : vector<128x4xf32>
    %2 = tpu.matmul %0, %1, %cst {dimension_numbers = #tpu.dot_dimension_numbers<[1], [0], [0], [1], [0, 0, 1, 1], [], []>} : vector<128x8xbf16>, vector<8x4xbf16>, vector<128x4xf32> -> vector<128x4xf32>
    %c0_3 = arith.constant 0 : index
    %c0_4 = arith.constant 0 : index
    %3 = vector.load %arg3[%c0_3, %c0_4] : memref<1x4xf32, #tpu.memory_space<vmem>>, vector<1x4xf32>
    %4 = vector.broadcast %3 : vector<1x4xf32> to vector<128x4xf32>
    %5 = arith.addf %2, %4 : vector<128x4xf32>
    %cst_5 = arith.constant 0.000000e+00 : f32
    %6 = vector.broadcast %cst_5 : f32 to vector<128x4xf32>
    %7 = arith.maximumf %5, %6 : vector<128x4xf32>
    %8 = arith.truncf %7 : vector<128x4xf32> to vector<128x4xbf16>
    %c0_6 = arith.constant 0 : index
    %c0_7 = arith.constant 0 : index
    %9 = vector.load %arg4[%c0_6, %c0_7] : memref<128x4xbf16, #tpu.memory_space<vmem>>, vector<128x4xbf16>
    tpu.vector_store %arg4[%c0_6, %c0_7], %8 {strides = array<i32>} : memref<128x4xbf16, #tpu.memory_space<vmem>>, vector<128x4xbf16>,
    return
  }
  func.func @transform_0(%arg0: i32) -> (i32, i32) {
    %c0_i32 = arith.constant 0 : i32
    %c0_i32_0 = arith.constant 0 : i32
    return %arg0, %c0_i32 : i32, i32
  }
  func.func @transform_1(%arg0: i32) -> (i32, i32) {
    %c0_i32 = arith.constant 0 : i32
    %c0_i32_0 = arith.constant 0 : i32
    %c0_i32_1 = arith.constant 0 : i32
    return %c0_i32, %c0_i32_0 : i32, i32
  }
  func.func @transform_2(%arg0: i32) -> (i32, i32) {
    %c0_i32 = arith.constant 0 : i32
    %c0_i32_0 = arith.constant 0 : i32
    %c0_i32_1 = arith.constant 0 : i32
    return %c0_i32, %c0_i32_0 : i32, i32
  }
  func.func @transform_3(%arg0: i32) -> (i32, i32) {
    %c0_i32 = arith.constant 0 : i32
    %c0_i32_0 = arith.constant 0 : i32
    return %arg0, %c0_i32 : i32, i32
  }
}

</mosaic_0001>

<llo_original>
// kernel: tpu_custom_call.1
$region0: #{tpu_custom_call.1}
  #allocation0 [shape = 'u32[]', space=smem, size = 0x4, offset = 0x4, fixed_abs, tag = 'smem constant byte address 0x4 - core index']
  #allocation1 [shape = 'u32[144,128]{1,0:T(1,128)}', space=vmem, size = 0x12000, scoped, tag = 'internal scratch']
  %s0 = inlined_call_operand.vmem [shape: bf16[128,8], index: 0, kind: input, shape index: {}]
  %s1 = inlined_call_operand.vmem [shape: bf16[8,4], index: 1, kind: input, shape index: {}]
  %s2 = inlined_call_operand.vmem [shape: f32[1,4], index: 2, kind: input, shape index: {}]
  %s3 = inlined_call_operand.vmem [shape: bf16[128,4], index: 3, kind: output, shape index: {}]
  %s4 = sld [smem:[#allocation0]]
  $region22: #{tpu_custom_call.1} parent=0
    _
  %s6 = ssub.s32 1, %s4
  %s7 = scalar_select 0, %s6, %s4
  // Predicated region
  $region2: #{tpu_custom_call.1} parent=0 // pred_check
    _
  $region3: #{tpu_custom_call.1} parent=0 // pred_check_branch
    %9 = sbr.rel (0) target = $region5
  $region4: #{tpu_custom_call.1} parent=0 // pred_region
    _
  $region5: #{tpu_custom_call.1} parent=0 // pred_fallthru
    _
  // Predicated region
  $region6: #{tpu_custom_call.1} parent=0 // pred_check
    _
  $region7: #{tpu_custom_call.1} parent=0 // pred_check_branch
    %11 = sbr.rel (0) target = $region9
  $region8: #{tpu_custom_call.1} parent=0 // pred_region
    _
  $region9: #{tpu_custom_call.1} parent=0 // pred_fallthru
    _
  // Predicated region
  $region10: #{tpu_custom_call.1} parent=0 // pred_check
    _
  $region11: #{tpu_custom_call.1} parent=0 // pred_check_branch
    %13 = sbr.rel (0) target = $region13
  $region12: #{tpu_custom_call.1} parent=0 // pred_region
    _
  $region13: #{tpu_custom_call.1} parent=0 // pred_fallthru
    _
  %v15 = vld [vmem:[%s0] sm:$0xf]
  %v16 = vld [vmem:[%s0 + $0x4] sm:$0xf]
  %v17 = vld [vmem:[%s0 + $0x8] sm:$0xf]
  %v18 = vld [vmem:[%s0 + $0xc] sm:$0xf]
  %v19 = vld [vmem:[%s0 + $0x10] sm:$0xf]
  %v20 = vld [vmem:[%s0 + $0x14] sm:$0xf]
  %v21 = vld [vmem:[%s0 + $0x18] sm:$0xf]
  %v22 = vld [vmem:[%s0 + $0x1c] sm:$0xf]
  %v23 = vld [vmem:[%s0 + $0x20] sm:$0xf]
  %v24 = vld [vmem:[%s0 + $0x24] sm:$0xf]
  %v25 = vld [vmem:[%s0 + $0x28] sm:$0xf]
  %v26 = vld [vmem:[%s0 + $0x2c] sm:$0xf]
  %v27 = vld [vmem:[%s0 + $0x30] sm:$0xf]
  %v28 = vld [vmem:[%s0 + $0x34] sm:$0xf]
  %v29 = vld [vmem:[%s0 + $0x38] sm:$0xf]
  %v30 = vld [vmem:[%s0 + $0x3c] sm:$0xf]
  %v31 = vld [vmem:[%s1] sm:$0xf]
  %v32 = vld [vmem:[%s2] sm:$0x1]
  %v34 = vlaneseq
  %v35 = vshrl.u32 %v34, 7
  %v36 = vsub.s32 0, %v35
  %v37 = vrot.slane %v32, %v36
  %v55 = vunpack.c.l.b16 %v15
  %v56 = vunpack.c.l.b16 %v16
  %v57 = vunpack.c.l.b16 %v17
  %v58 = vunpack.c.l.b16 %v18
  %v59 = vunpack.c.l.b16 %v19
  %v60 = vunpack.c.l.b16 %v20
  %v61 = vunpack.c.l.b16 %v21
  %v62 = vunpack.c.l.b16 %v22
  %v63 = vunpack.c.l.b16 %v23
  %v64 = vunpack.c.l.b16 %v24
  %v65 = vunpack.c.l.b16 %v25
  %v66 = vunpack.c.l.b16 %v26
  %v67 = vunpack.c.l.b16 %v27
  %v68 = vunpack.c.l.b16 %v28
  %v69 = vunpack.c.l.b16 %v29
  %v70 = vunpack.c.l.b16 %v30
  %v71 = vpack.c.b16 %v56, %v55
  %v72 = vpack.c.b16 %v58, %v57
  %v73 = vpack.c.b16 %v60, %v59
  %v74 = vpack.c.b16 %v62, %v61
  %v75 = vpack.c.b16 %v64, %v63
  %v76 = vpack.c.b16 %v66, %v65
  %v77 = vpack.c.b16 %v68, %v67
  %v78 = vpack.c.b16 %v70, %v69
  %vm79 = vcmask 64512
  %v81 = vsel %vm79, %v71, 0
  %v84 = vsel %vm79, %v72, 0
  %v87 = vsel %vm79, %v73, 0
  %v90 = vsel %vm79, %v74, 0
  %v93 = vsel %vm79, %v75, 0
  %v96 = vsel %vm79, %v76, 0
  %v99 = vsel %vm79, %v77, 0
  %v102 = vsel %vm79, %v78, 0
  %vm104 = vcmask 1043456
  %v106 = vsel %vm104, %v31, 0
  %108 = vmatprep.subr.bf16.mxu0 0
  %109 = vmatpush1.bf16.msra.mxu0 %v106
  %110 = vmatprep.subr.bf16.mxu0 0
  %111 = vmatpush1.bf16.msra.mxu0 0
  %112 = vmatprep.subr.bf16.mxu0 0
  %113 = vmatpush1.bf16.msra.mxu0 0
  %114 = vmatprep.subr.bf16.mxu0 0
  %115 = vmatpush1.bf16.msra.mxu0 0
  %116 = vmatprep.subr.bf16.mxu0 0
  %117 = vmatpush1.bf16.msra.mxu0 0
  %118 = vmatprep.subr.bf16.mxu0 0
  %119 = vmatpush1.bf16.msra.mxu0 0
  %120 = vmatprep.subr.bf16.mxu0 0
  %121 = vmatpush1.bf16.msra.mxu0 0
  %122 = vmatprep.subr.bf16.mxu0 0
  %123 = vmatpush1.bf16.msra.mxu0 0
  %124 = vmatprep.subr.bf16.mxu0 0
  %125 = vmatpush1.bf16.msra.mxu0 0
  %126 = vmatprep.subr.bf16.mxu0 0
  %127 = vmatpush1.bf16.msra.mxu0 0
  %128 = vmatprep.subr.bf16.mxu0 0
  %129 = vmatpush1.bf16.msra.mxu0 0
  %130 = vmatprep.subr.bf16.mxu0 0
  %131 = vmatpush1.bf16.msra.mxu0 0
  %132 = vmatprep.subr.bf16.mxu0 0
  %133 = vmatpush1.bf16.msra.mxu0 0
  %134 = vmatprep.subr.bf16.mxu0 0
  %135 = vmatpush1.bf16.msra.mxu0 0
  %136 = vmatprep.subr.bf16.mxu0 0
  %137 = vmatpush1.bf16.msra.mxu0 0
  %138 = vmatprep.subr.bf16.mxu0 0
  %139 = vmatpush1.bf16.msra.mxu0 0
  %140 = vmatprep.mubr.bf16.mxu0 0
  %141 = vmatmul.mubr.bf16.gmra.mrb[0].mxu0 %v81
  %v142 = vpop.f32.mrb[0].mxu0
  %v143 = vadd.f32 %v37, %v142
  %v144 = vpop.f32.mrb[0].mxu0
  %v145 = vpop.f32.mrb[0].mxu0
  %v146 = vadd.f32 %v37, %v145
  %v147 = vpop.f32.mrb[0].mxu0
  %148 = vmatprep.mubr.bf16.mxu0 0
  %149 = vmatmul.mubr.bf16.gmra.mrb[0].mxu0 %v84
  %v150 = vpop.f32.mrb[0].mxu0
  %v151 = vadd.f32 %v37, %v150
  %v152 = vpop.f32.mrb[0].mxu0
  %v153 = vpop.f32.mrb[0].mxu0
  %v154 = vadd.f32 %v37, %v153
  %v155 = vpop.f32.mrb[0].mxu0
  %156 = vmatprep.mubr.bf16.mxu0 0
  %157 = vmatmul.mubr.bf16.gmra.mrb[0].mxu0 %v87
  %v158 = vpop.f32.mrb[0].mxu0
  %v159 = vadd.f32 %v37, %v158
  %v160 = vpop.f32.mrb[0].mxu0
  %v161 = vpop.f32.mrb[0].mxu0
  %v162 = vadd.f32 %v37, %v161
  %v163 = vpop.f32.mrb[0].mxu0
  %164 = vmatprep.mubr.bf16.mxu0 0
  %165 = vmatmul.mubr.bf16.gmra.mrb[0].mxu0 %v90
  %v166 = vpop.f32.mrb[0].mxu0
  %v167 = vadd.f32 %v37, %v166
  %v168 = vpop.f32.mrb[0].mxu0
  %v169 = vpop.f32.mrb[0].mxu0
  %v170 = vadd.f32 %v37, %v169
  %v171 = vpop.f32.mrb[0].mxu0
  %172 = vmatprep.mubr.bf16.mxu0 0
  %173 = vmatmul.mubr.bf16.gmra.mrb[0].mxu0 %v93
  %v174 = vpop.f32.mrb[0].mxu0
  %v175 = vadd.f32 %v37, %v174
  %v176 = vpop.f32.mrb[0].mxu0
  %v177 = vpop.f32.mrb[0].mxu0
  %v178 = vadd.f32 %v37, %v177
  %v179 = vpop.f32.mrb[0].mxu0
  %180 = vmatprep.mubr.bf16.mxu0 0
  %181 = vmatmul.mubr.bf16.gmra.mrb[0].mxu0 %v96
  %v182 = vpop.f32.mrb[0].mxu0
  %v183 = vadd.f32 %v37, %v182
  %v184 = vpop.f32.mrb[0].mxu0
  %v185 = vpop.f32.mrb[0].mxu0
  %v186 = vadd.f32 %v37, %v185
  %v187 = vpop.f32.mrb[0].mxu0
  %188 = vmatprep.mubr.bf16.mxu0 0
  %189 = vmatmul.mubr.bf16.gmra.mrb[0].mxu0 %v99
  %v190 = vpop.f32.mrb[0].mxu0
  %v191 = vadd.f32 %v37, %v190
  %v192 = vpop.f32.mrb[0].mxu0
  %v193 = vpop.f32.mrb[0].mxu0
  %v194 = vadd.f32 %v37, %v193
  %v195 = vpop.f32.mrb[0].mxu0
  %196 = vmatprep.mubr.bf16.mxu0 0
  %197 = vmatmul.mubr.bf16.gmra.mrb[0].mxu0 %v102
  %v198 = vpop.f32.mrb[0].mxu0
  %v199 = vadd.f32 %v37, %v198
  %v200 = vpop.f32.mrb[0].mxu0
  %v201 = vpop.f32.mrb[0].mxu0
  %v202 = vadd.f32 %v37, %v201
  %v203 = vpop.f32.mrb[0].mxu0
  %204 = vdwg.mxu0
  %v205 = vmax.f32 %v143, 0.0
  %v206 = vmax.f32 %v146, 0.0
  %v207 = vmax.f32 %v151, 0.0
  %v208 = vmax.f32 %v154, 0.0
  %v209 = vmax.f32 %v159, 0.0
  %v210 = vmax.f32 %v162, 0.0
  %v211 = vmax.f32 %v167, 0.0
  %v212 = vmax.f32 %v170, 0.0
  %v213 = vmax.f32 %v175, 0.0
  %v214 = vmax.f32 %v178, 0.0
  %v215 = vmax.f32 %v183, 0.0
  %v216 = vmax.f32 %v186, 0.0
  %v217 = vmax.f32 %v191, 0.0
  %v218 = vmax.f32 %v194, 0.0
  %v219 = vmax.f32 %v199, 0.0
  %v220 = vmax.f32 %v202, 0.0
  %v221 = vpack.c.bf16 %v206, %v205
  %v222 = vpack.c.bf16 %v208, %v207
  %v223 = vpack.c.bf16 %v210, %v209
  %v224 = vpack.c.bf16 %v212, %v211
  %v225 = vpack.c.bf16 %v214, %v213
  %v226 = vpack.c.bf16 %v216, %v215
  %v227 = vpack.c.bf16 %v218, %v217
  %v228 = vpack.c.bf16 %v220, %v219
  %v237 = vunpack.c.l.b16 %v221
  %v238 = vunpack.c.h.b16 %v221
  %v239 = vunpack.c.l.b16 %v222
  %v240 = vunpack.c.h.b16 %v222
  %v241 = vunpack.c.l.b16 %v223
  %v242 = vunpack.c.h.b16 %v223
  %v243 = vunpack.c.l.b16 %v224
  %v244 = vunpack.c.h.b16 %v224
  %v245 = vunpack.c.l.b16 %v225
  %v246 = vunpack.c.h.b16 %v225
  %v247 = vunpack.c.l.b16 %v226
  %v248 = vunpack.c.h.b16 %v226
  %v249 = vunpack.c.l.b16 %v227
  %v250 = vunpack.c.h.b16 %v227
  %v251 = vunpack.c.l.b16 %v228
  %v252 = vunpack.c.h.b16 %v228
  %v253 = vpack.c.b16 %v237, %v237
  %v254 = vpack.c.b16 %v238, %v238
  %v255 = vpack.c.b16 %v239, %v239
  %v256 = vpack.c.b16 %v240, %v240
  %v257 = vpack.c.b16 %v241, %v241
  %v258 = vpack.c.b16 %v242, %v242
  %v259 = vpack.c.b16 %v243, %v243
  %v260 = vpack.c.b16 %v244, %v244
  %v261 = vpack.c.b16 %v245, %v245
  %v262 = vpack.c.b16 %v246, %v246
  %v263 = vpack.c.b16 %v247, %v247
  %v264 = vpack.c.b16 %v248, %v248
  %v265 = vpack.c.b16 %v249, %v249
  %v266 = vpack.c.b16 %v250, %v250
  %v267 = vpack.c.b16 %v251, %v251
  %v268 = vpack.c.b16 %v252, %v252
  %vm285 = vcmask 27648
  %286 = vst.msk [vmem:[%s3] sm:$0xf] %vm285, %v253
  %287 = vst.msk [vmem:[%s3 + $0x4] sm:$0xf] %vm285, %v254
  %288 = vst.msk [vmem:[%s3 + $0x8] sm:$0xf] %vm285, %v255
  %289 = vst.msk [vmem:[%s3 + $0xc] sm:$0xf] %vm285, %v256
  %290 = vst.msk [vmem:[%s3 + $0x10] sm:$0xf] %vm285, %v257
  %291 = vst.msk [vmem:[%s3 + $0x14] sm:$0xf] %vm285, %v258
  %292 = vst.msk [vmem:[%s3 + $0x18] sm:$0xf] %vm285, %v259
  %293 = vst.msk [vmem:[%s3 + $0x1c] sm:$0xf] %vm285, %v260
  %294 = vst.msk [vmem:[%s3 + $0x20] sm:$0xf] %vm285, %v261
  %295 = vst.msk [vmem:[%s3 + $0x24] sm:$0xf] %vm285, %v262
  %296 = vst.msk [vmem:[%s3 + $0x28] sm:$0xf] %vm285, %v263
  %297 = vst.msk [vmem:[%s3 + $0x2c] sm:$0xf] %vm285, %v264
  %298 = vst.msk [vmem:[%s3 + $0x30] sm:$0xf] %vm285, %v265
  %299 = vst.msk [vmem:[%s3 + $0x34] sm:$0xf] %vm285, %v266
  %300 = vst.msk [vmem:[%s3 + $0x38] sm:$0xf] %vm285, %v267
  %301 = vst.msk [vmem:[%s3 + $0x3c] sm:$0xf] %vm285, %v268
  // Predicated region
  $region14: #{tpu_custom_call.1} parent=0 // pred_check
    _
  $region15: #{tpu_custom_call.1} parent=0 // pred_check_branch
    %303 = sbr.rel (0) target = $region17
  $region16: #{tpu_custom_call.1} parent=0 // pred_region
    _
  $region17: #{tpu_custom_call.1} parent=0 // pred_fallthru
    _
  // Predicated region
  $region18: #{tpu_custom_call.1} parent=0 // pred_check
    _
  $region19: #{tpu_custom_call.1} parent=0 // pred_check_branch
    %305 = sbr.rel (0) target = $region21
  $region20: #{tpu_custom_call.1} parent=0 // pred_region
    _
  $region21: #{tpu_custom_call.1} parent=0 // pred_fallthru
    _

</llo_original>
